<compile_context>
chip_gen: v7x
topology: tpu7x:2x2x1
jax: 0.10.0
libtpu: 0.0.40
codegen_flags: <defaults>
</compile_context>

<pallas_src>
import jax
import jax.numpy as jnp
from jax.experimental import pallas as pl
from jax.experimental.pallas import tpu as pltpu

N_IN, H1, H2, N_OUT = 5, 256, 128, 2
OUT_PAD = 128  # lane-dense padded fc3 width (real outputs are the first 2 lanes)


def _round_up(n, m):
    return ((n + m - 1) // m) * m


def mlp_kernel(x_ref, w1_ref, b1_ref, w2_ref, b2_ref, w3_ref, b3_ref, o_ref):
    x = x_ref[...]          # (TB, 5)   f32
    w1 = w1_ref[...]        # (5, 256)  f32

    # fc1 on the VPU: K=5 contraction as 5 unrolled broadcast-FMAs, bias folded
    # into the accumulator init (avoids pushing a 5-deep, >95%-padded
    # contraction through the MXU).
    acc = b1_ref[...] + x[:, 0:1] * w1[0:1, :]
    for k in range(1, N_IN):
        acc = acc + x[:, k:k + 1] * w1[k:k + 1, :]
    h1 = jnp.maximum(acc, 0.0)                            # (TB, 256) f32
    # dropout(p=0.3): identity in eval mode

    # fc2 + ReLU on the MXU: bf16 inputs, f32 accumulation, f32 bias/ReLU.
    h2 = jnp.dot(h1.astype(jnp.bfloat16), w2_ref[...],
                 preferred_element_type=jnp.float32)
    h2 = jnp.maximum(h2 + b2_ref[...], 0.0)               # (TB, 128) f32
    # dropout(p=0.3): identity in eval mode

    # fc3 on the MXU, output padded to 128 lanes -> unmasked lane-dense store.
    out = jnp.dot(h2.astype(jnp.bfloat16), w3_ref[...],
                  preferred_element_type=jnp.float32)
    o_ref[...] = (out + b3_ref[...]).astype(o_ref.dtype)  # (TB, 128)


def net_forward(x, params, *, block_b=1024):
    """x: (B, 5) f32; params: f32 weights stored (in, out). Returns (B, 2) f32."""
    w1, b1, w2, b2, w3, b3 = params
    B = x.shape[0]

    # Batch tile: multiple of 8 (sublanes). Default 1024 keeps the per-tile
    # working set (~2.5 MiB incl. double-buffering) far below the scoped-VMEM
    # limit on all chips while amortizing the ~0.35 µs per-grid-step overhead.
    TB = min(block_b, _round_up(B, 8))
    B_pad = _round_up(B, TB)
    if B_pad != B:
        x = jnp.pad(x, ((0, B_pad - B), (0, 0)))

    # bf16 weights for the MXU layers (halves DMA bytes + VMEM residency).
    w2b = w2.astype(jnp.bfloat16)
    # Zero-pad fc3 to 128 output lanes so the kernel writes a lane-dense slab.
    w3p = jnp.pad(w3, ((0, 0), (0, OUT_PAD - N_OUT))).astype(jnp.bfloat16)
    b3p = jnp.pad(b3, ((0, 0), (0, OUT_PAD - N_OUT)))

    grid = (pl.cdiv(B_pad, TB),)
    const = lambda i: (0, 0)  # weights/biases: same block every step -> resident

    flops = B_pad * 2 * (N_IN * H1 + H1 * H2 + H2 * OUT_PAD)
    bytes_accessed = (
        B_pad * N_IN * 4 + B_pad * OUT_PAD * 4          # x in, out
        + N_IN * H1 * 4 + H1 * 4                        # w1, b1 (f32)
        + H1 * H2 * 2 + H2 * 4                          # w2 (bf16), b2
        + H2 * OUT_PAD * 2 + OUT_PAD * 4                # w3 (bf16), b3
    )

    out_padded = pl.pallas_call(
        mlp_kernel,
        out_shape=jax.ShapeDtypeStruct((B_pad, OUT_PAD), jnp.float32),
        grid=grid,
        in_specs=[
            pl.BlockSpec((TB, N_IN), lambda i: (i, 0)),   # x tile (pipelined)
            pl.BlockSpec((N_IN, H1), const),              # w1 (f32, VPU)
            pl.BlockSpec((1, H1), const),                 # b1
            pl.BlockSpec((H1, H2), const),                # w2 (bf16)
            pl.BlockSpec((1, H2), const),                 # b2
            pl.BlockSpec((H2, OUT_PAD), const),           # w3 padded (bf16)
            pl.BlockSpec((1, OUT_PAD), const),            # b3 padded
        ],
        out_specs=pl.BlockSpec((TB, OUT_PAD), lambda i: (i, 0)),
        compiler_params=pltpu.CompilerParams(
            dimension_semantics=("parallel",),            # megacore on v7x
            vmem_limit_bytes=32 * 1024 * 1024,
        ),
        cost_estimate=pl.CostEstimate(
            flops=flops, transcendentals=0, bytes_accessed=bytes_accessed),
    )(x, w1, b1, w2b, b2, w3p, b3p)

    return out_padded[:B, :N_OUT]


def init_params(key):
    """Deterministic init mirroring nn.Linear's U(-1/sqrt(fan_in), 1/sqrt(fan_in))."""
    dims = [(N_IN, H1), (H1, H2), (H2, N_OUT)]
    params = []
    for i, (fan_in, fan_out) in enumerate(dims):
        kw, kb = jax.random.split(jax.random.fold_in(key, i))
        bound = 1.0 / jnp.sqrt(jnp.float32(fan_in))
        # stored as (in, out) so the kernel computes x @ W + b
        w = jax.random.uniform(kw, (fan_in, fan_out), jnp.float32, -bound, bound)
        b = jax.random.uniform(kb, (1, fan_out), jnp.float32, -bound, bound)
        params += [w, b]
    return tuple(params)


if __name__ == "__main__":
    key = jax.random.PRNGKey(0)
    kx, kp = jax.random.split(key)

    B = 64
    x = jax.random.normal(kx, (B, N_IN), jnp.float32)
    params = init_params(kp)

    # block_b=32 -> 2 grid steps, exercising the batch tiling + resident weights.
    out = net_forward(x, params, block_b=32)
    jax.block_until_ready(out)

    # Also exercise the default (single-step) tiling path.
    out_single = net_forward(x, params)
    jax.block_until_ready(out_single)

    # Pure-JAX reference using the same precision recipe
    # (f32 fc1, bf16-in / f32-accumulate fc2 & fc3).
    w1, b1, w2, b2, w3, b3 = params
    ref = jnp.maximum(x @ w1 + b1, 0.0)
    ref = jnp.maximum(
        jnp.dot(ref.astype(jnp.bfloat16), w2.astype(jnp.bfloat16),
                preferred_element_type=jnp.float32) + b2, 0.0)
    ref = jnp.dot(ref.astype(jnp.bfloat16), w3.astype(jnp.bfloat16),
                  preferred_element_type=jnp.float32) + b3

    assert out.shape == (B, N_OUT)
    assert jnp.allclose(out, ref, atol=5e-2, rtol=5e-2)
    assert jnp.allclose(out_single, ref, atol=5e-2, rtol=5e-2)
    assert bool(jnp.all(jnp.isfinite(out)))

    print("KERNEL_OK")
</pallas_src>

<mosaic_0001>
module attributes {stable_mosaic.version = 11 : i64} {
  func.func @mlp_kernel(%arg0: i32, %arg1: memref<32x5xf32, #tpu.memory_space<vmem>>, %arg2: memref<5x256xf32, #tpu.memory_space<vmem>>, %arg3: memref<1x256xf32, #tpu.memory_space<vmem>>, %arg4: memref<256x128xbf16, #tpu.memory_space<vmem>>, %arg5: memref<1x128xf32, #tpu.memory_space<vmem>>, %arg6: memref<128x128xbf16, #tpu.memory_space<vmem>>, %arg7: memref<1x128xf32, #tpu.memory_space<vmem>>, %arg8: memref<32x128xf32, #tpu.memory_space<vmem>>) attributes {dimension_semantics = [#tpu.dimension_semantics<parallel>], iteration_bounds = array<i64: 2>, scalar_prefetch = 0 : i64, scratch_operands = 0 : i64, tpu.core_type = #tpu.core_type<tc>, window_params = [{transform_indices = @transform_0, window_bounds = array<i64: 32, 5>}, {pipeline_mode = #tpu.pipeline_mode<synchronous>, transform_indices = @transform_1, window_bounds = array<i64: 5, 256>}, {pipeline_mode = #tpu.pipeline_mode<synchronous>, transform_indices = @transform_2, window_bounds = array<i64: 1, 256>}, {pipeline_mode = #tpu.pipeline_mode<synchronous>, transform_indices = @transform_3, window_bounds = array<i64: 256, 128>}, {pipeline_mode = #tpu.pipeline_mode<synchronous>, transform_indices = @transform_4, window_bounds = array<i64: 1, 128>}, {pipeline_mode = #tpu.pipeline_mode<synchronous>, transform_indices = @transform_5, window_bounds = array<i64: 128, 128>}, {pipeline_mode = #tpu.pipeline_mode<synchronous>, transform_indices = @transform_6, window_bounds = array<i64: 1, 128>}, {transform_indices = @transform_7, window_bounds = array<i64: 32, 128>}]} {
    %c0 = arith.constant 0 : index
    %c0_0 = arith.constant 0 : index
    %0 = vector.load %arg1[%c0, %c0_0] : memref<32x5xf32, #tpu.memory_space<vmem>>, vector<32x5xf32>
    %c0_1 = arith.constant 0 : index
    %c0_2 = arith.constant 0 : index
    %1 = vector.load %arg2[%c0_1, %c0_2] : memref<5x256xf32, #tpu.memory_space<vmem>>, vector<5x256xf32>
    %c0_3 = arith.constant 0 : index
    %c0_4 = arith.constant 0 : index
    %2 = vector.load %arg3[%c0_3, %c0_4] : memref<1x256xf32, #tpu.memory_space<vmem>>, vector<1x256xf32>
    %3 = vector.extract_strided_slice %0 {offsets = [0, 0], sizes = [32, 1], strides = [1, 1]} : vector<32x5xf32> to vector<32x1xf32>
    %4 = vector.extract_strided_slice %1 {offsets = [0, 0], sizes = [1, 256], strides = [1, 1]} : vector<5x256xf32> to vector<1x256xf32>
    %5 = vector.broadcast %3 : vector<32x1xf32> to vector<32x256xf32>
    %6 = vector.broadcast %4 : vector<1x256xf32> to vector<32x256xf32>
    %7 = arith.mulf %5, %6 : vector<32x256xf32>
    %8 = vector.broadcast %2 : vector<1x256xf32> to vector<32x256xf32>
    %9 = arith.addf %8, %7 : vector<32x256xf32>
    %10 = vector.extract_strided_slice %0 {offsets = [0, 1], sizes = [32, 1], strides = [1, 1]} : vector<32x5xf32> to vector<32x1xf32>
    %11 = vector.extract_strided_slice %1 {offsets = [1, 0], sizes = [1, 256], strides = [1, 1]} : vector<5x256xf32> to vector<1x256xf32>
    %12 = vector.broadcast %10 : vector<32x1xf32> to vector<32x256xf32>
    %13 = vector.broadcast %11 : vector<1x256xf32> to vector<32x256xf32>
    %14 = arith.mulf %12, %13 : vector<32x256xf32>
    %15 = arith.addf %9, %14 : vector<32x256xf32>
    %16 = vector.extract_strided_slice %0 {offsets = [0, 2], sizes = [32, 1], strides = [1, 1]} : vector<32x5xf32> to vector<32x1xf32>
    %17 = vector.extract_strided_slice %1 {offsets = [2, 0], sizes = [1, 256], strides = [1, 1]} : vector<5x256xf32> to vector<1x256xf32>
    %18 = vector.broadcast %16 : vector<32x1xf32> to vector<32x256xf32>
    %19 = vector.broadcast %17 : vector<1x256xf32> to vector<32x256xf32>
    %20 = arith.mulf %18, %19 : vector<32x256xf32>
    %21 = arith.addf %15, %20 : vector<32x256xf32>
    %22 = vector.extract_strided_slice %0 {offsets = [0, 3], sizes = [32, 1], strides = [1, 1]} : vector<32x5xf32> to vector<32x1xf32>
    %23 = vector.extract_strided_slice %1 {offsets = [3, 0], sizes = [1, 256], strides = [1, 1]} : vector<5x256xf32> to vector<1x256xf32>
    %24 = vector.broadcast %22 : vector<32x1xf32> to vector<32x256xf32>
    %25 = vector.broadcast %23 : vector<1x256xf32> to vector<32x256xf32>
    %26 = arith.mulf %24, %25 : vector<32x256xf32>
    %27 = arith.addf %21, %26 : vector<32x256xf32>
    %28 = vector.extract_strided_slice %0 {offsets = [0, 4], sizes = [32, 1], strides = [1, 1]} : vector<32x5xf32> to vector<32x1xf32>
    %29 = vector.extract_strided_slice %1 {offsets = [4, 0], sizes = [1, 256], strides = [1, 1]} : vector<5x256xf32> to vector<1x256xf32>
    %30 = vector.broadcast %28 : vector<32x1xf32> to vector<32x256xf32>
    %31 = vector.broadcast %29 : vector<1x256xf32> to vector<32x256xf32>
    %32 = arith.mulf %30, %31 : vector<32x256xf32>
    %33 = arith.addf %27, %32 : vector<32x256xf32>
    %cst = arith.constant 0.000000e+00 : f32
    %34 = vector.broadcast %cst : f32 to vector<32x256xf32>
    %35 = arith.maximumf %33, %34 : vector<32x256xf32>
    %36 = arith.truncf %35 : vector<32x256xf32> to vector<32x256xbf16>
    %c0_5 = arith.constant 0 : index
    %c0_6 = arith.constant 0 : index
    %37 = vector.load %arg4[%c0_5, %c0_6] : memref<256x128xbf16, #tpu.memory_space<vmem>>, vector<256x128xbf16>
    %cst_7 = arith.constant dense<0.000000e+00> : vector<32x128xf32>
    %38 = tpu.matmul %36, %37, %cst_7 {dimension_numbers = #tpu.dot_dimension_numbers<[1], [0], [0], [1], [0, 0, 1, 1], [], []>} : vector<32x256xbf16>, vector<256x128xbf16>, vector<32x128xf32> -> vector<32x128xf32>
    %c0_8 = arith.constant 0 : index
    %c0_9 = arith.constant 0 : index
    %39 = vector.load %arg5[%c0_8, %c0_9] : memref<1x128xf32, #tpu.memory_space<vmem>>, vector<1x128xf32>
    %40 = vector.broadcast %39 : vector<1x128xf32> to vector<32x128xf32>
    %41 = arith.addf %38, %40 : vector<32x128xf32>
    %cst_10 = arith.constant 0.000000e+00 : f32
    %42 = vector.broadcast %cst_10 : f32 to vector<32x128xf32>
    %43 = arith.maximumf %41, %42 : vector<32x128xf32>
    %44 = arith.truncf %43 : vector<32x128xf32> to vector<32x128xbf16>
    %c0_11 = arith.constant 0 : index
    %c0_12 = arith.constant 0 : index
    %45 = vector.load %arg6[%c0_11, %c0_12] : memref<128x128xbf16, #tpu.memory_space<vmem>>, vector<128x128xbf16>
    %cst_13 = arith.constant dense<0.000000e+00> : vector<32x128xf32>
    %46 = tpu.matmul %44, %45, %cst_13 {dimension_numbers = #tpu.dot_dimension_numbers<[1], [0], [0], [1], [0, 0, 1, 1], [], []>} : vector<32x128xbf16>, vector<128x128xbf16>, vector<32x128xf32> -> vector<32x128xf32>
    %c0_14 = arith.constant 0 : index
    %c0_15 = arith.constant 0 : index
    %47 = vector.load %arg7[%c0_14, %c0_15] : memref<1x128xf32, #tpu.memory_space<vmem>>, vector<1x128xf32>
    %48 = vector.broadcast %47 : vector<1x128xf32> to vector<32x128xf32>
    %49 = arith.addf %46, %48 : vector<32x128xf32>
    %c0_16 = arith.constant 0 : index
    %c0_17 = arith.constant 0 : index
    %50 = vector.load %arg8[%c0_16, %c0_17] : memref<32x128xf32, #tpu.memory_space<vmem>>, vector<32x128xf32>
    tpu.vector_store %arg8[%c0_16, %c0_17], %49 {strides = array<i32>} : memref<32x128xf32, #tpu.memory_space<vmem>>, vector<32x128xf32>,
    return
  }
  func.func @transform_0(%arg0: i32) -> (i32, i32) {
    %c0_i32 = arith.constant 0 : i32
    %c0_i32_0 = arith.constant 0 : i32
    return %arg0, %c0_i32 : i32, i32
  }
  func.func @transform_1(%arg0: i32) -> (i32, i32) {
    %c0_i32 = arith.constant 0 : i32
    %c0_i32_0 = arith.constant 0 : i32
    %c0_i32_1 = arith.constant 0 : i32
    return %c0_i32, %c0_i32_0 : i32, i32
  }
  func.func @transform_2(%arg0: i32) -> (i32, i32) {
    %c0_i32 = arith.constant 0 : i32
    %c0_i32_0 = arith.constant 0 : i32
    %c0_i32_1 = arith.constant 0 : i32
    return %c0_i32, %c0_i32_0 : i32, i32
  }
  func.func @transform_3(%arg0: i32) -> (i32, i32) {
    %c0_i32 = arith.constant 0 : i32
    %c0_i32_0 = arith.constant 0 : i32
    %c0_i32_1 = arith.constant 0 : i32
    return %c0_i32, %c0_i32_0 : i32, i32
  }
  func.func @transform_4(%arg0: i32) -> (i32, i32) {
    %c0_i32 = arith.constant 0 : i32
    %c0_i32_0 = arith.constant 0 : i32
    %c0_i32_1 = arith.constant 0 : i32
    return %c0_i32, %c0_i32_0 : i32, i32
  }
  func.func @transform_5(%arg0: i32) -> (i32, i32) {
    %c0_i32 = arith.constant 0 : i32
    %c0_i32_0 = arith.constant 0 : i32
    %c0_i32_1 = arith.constant 0 : i32
    return %c0_i32, %c0_i32_0 : i32, i32
  }
  func.func @transform_6(%arg0: i32) -> (i32, i32) {
    %c0_i32 = arith.constant 0 : i32
    %c0_i32_0 = arith.constant 0 : i32
    %c0_i32_1 = arith.constant 0 : i32
    return %c0_i32, %c0_i32_0 : i32, i32
  }
  func.func @transform_7(%arg0: i32) -> (i32, i32) {
    %c0_i32 = arith.constant 0 : i32
    %c0_i32_0 = arith.constant 0 : i32
    return %arg0, %c0_i32 : i32, i32
  }
}

</mosaic_0001>

<llo_original>
// kernel: tpu_custom_call.1
$region0: #{tpu_custom_call.1}
  #allocation0 [shape = 'u32[]', space=smem, size = 0x4, offset = 0x4, fixed_abs, tag = 'smem constant byte address 0x4 - core index']
  #allocation1 [shape = 'u32[144,128]{1,0:T(1,128)}', space=vmem, size = 0x12000, scoped, tag = 'internal scratch']
  %s0 = inlined_call_operand.vmem [shape: f32[64,5], index: 0, kind: input, shape index: {}]
  %s1 = inlined_call_operand.vmem [shape: f32[5,256], index: 1, kind: input, shape index: {}]
  %s2 = inlined_call_operand.vmem [shape: f32[1,256], index: 2, kind: input, shape index: {}]
  %s3 = inlined_call_operand.hbm [shape: bf16[256,128], index: 3, kind: input, shape index: {}]
  %s4 = inlined_call_operand.vmem [shape: f32[1,128], index: 4, kind: input, shape index: {}]
  %s5 = inlined_call_operand.vmem [shape: bf16[128,128], index: 5, kind: input, shape index: {}]
  %s6 = inlined_call_operand.vmem [shape: f32[1,128], index: 6, kind: input, shape index: {}]
  %s7 = inlined_call_operand.hbm [shape: f32[64,128], index: 7, kind: output, shape index: {}]
  %s8 = sld [smem:[#allocation0]]
  $region65: #{tpu_custom_call.1} parent=0
    _
  %s10 = ssub.s32 1, %s8
  %s11 = scalar_select 0, %s10, %s8
  $region1: #{tpu_custom_call.1} parent=0
    #allocation2 [shape = 'u8[65536]{0}', space=vmem, size = 0x10000, scoped, tag = 'input window, operand 3, single buffered']
    #allocation3 [shape = 's32[2]{0}', space=sflag, size = 0x8, scoped, tag = 'scoped memory for tpu_custom_call.1']
    #allocation4 [shape = 's32[2]{0}', space=sflag, size = 0x8, scoped, tag = 'scoped memory for tpu_custom_call.1']
    #allocation5 [shape = 'u8[32768]{0}', space=vmem, size = 0x8000, scoped, tag = 'output window, operand 0']
    %12 = vsyncpa [#allocation3], 0
    %13 = vsyncpa [#allocation4], 0
    %s14 = scalar_lea.sflag [#allocation4], 1
    %15 = vsyncpa %s14, 0
    loop: start=0, step=1, limit=4
    $region2: #{tpu_custom_call.1} parent=1 // loop_pre_header
      _
    $region3: #{tpu_custom_call.1} parent=1 // loop_header
      %s17 = sphi 0, %s21
      %p18 = scmp.ge.s32.totalorder %s17, 4
      %s27 = sphi 0, %s29
      %s30 = sphi 0, %s27
      %s31 = sphi 0, %s30
      %s47 = sphi 0, %s31
      %s51 = sphi 0, %s51
      %s53 = sphi 0, %s51
      %s54 = sphi 0, %s53
      %s68 = sphi 0, %s54
      %s72 = sphi 0, %s72
      %s74 = sphi 0, %s72
      %s75 = sphi 0, %s74
      %s89 = sphi 0, %s75
      %s93 = sphi 0, %s93
      %s95 = sphi 0, %s93
      %s96 = sphi 0, %s95
      %s110 = sphi 0, %s96
      %s114 = sphi 0, %s114
      %s116 = sphi 0, %s114
      %s117 = sphi 0, %s116
      %s131 = sphi 0, %s117
      %s135 = sphi 0, %s135
      %s137 = sphi 0, %s135
      %s138 = sphi 0, %s137
      %s152 = sphi 0, %s138
      %s156 = sphi 0, %s156
      %s158 = sphi 0, %s156
      %s159 = sphi 0, %s158
      %s173 = sphi 0, %s159
      %s179 = sphi 0, %s181
      %s182 = sphi 0, %s179
      %s183 = sphi 0, %s182
      %s199 = sphi 0, %s183
    $region4: #{tpu_custom_call.1} parent=1 // loop_header_branch
      %20 = sbr.rel (%p18) target = $region8
    $region5: #{tpu_custom_call.1} parent=1 // loop_body
      %s22 = ssub.s32 %s17, 1
      %s23 = ssub.s32 %s17, 2
      %s24 = sadd.s32 %s17, 1
      %s25 = ssub.s32 %s17, %s24
      %p26 = scmp.eq.s32.totalorder %s25, 0
      %s28 = sadd.s32 %s27, 1
      %s29 = scalar_select %p26, %s27, %s28
      %p32 = pneg %p26
      %p33 = scmp.eq.s32.totalorder %s17, 1
      %p34 = por %p32, %p33
      %p35 = scmp.ne.s32.totalorder %s27, %s30
      %p36 = scmp.eq.s32.totalorder %s17, 0
      %p37 = por %p35, %p36
      %p38 = scmp.ne.s32.totalorder %s27, %s30
      %p39 = scmp.eq.s32.totalorder %s22, 1
      %p40 = por %p38, %p39
      %p41 = scmp.ne.s32.totalorder %s30, %s31
      %p42 = scmp.eq.s32.totalorder %s22, 0
      %p43 = por %p41, %p42
      %p44 = scmp.ne.s32.totalorder %s30, %s31
      %p45 = scmp.eq.s32.totalorder %s23, 1
      %p46 = por %p44, %p45
      %p48 = scmp.ne.s32.totalorder %s31, %s47
      %p49 = scmp.eq.s32.totalorder %s23, 0
      %p50 = por %p48, %p49
      %s52 = sadd.s32 %s51, 1
      %p55 = scmp.eq.s32.totalorder %s17, 1
      %p56 = scmp.ne.s32.totalorder %s51, %s53
      %p57 = scmp.eq.s32.totalorder %s17, 0
      %p58 = por %p56, %p57
      %p59 = scmp.ne.s32.totalorder %s51, %s53
      %p60 = scmp.eq.s32.totalorder %s22, 1
      %p61 = por %p59, %p60
      %p62 = scmp.ne.s32.totalorder %s53, %s54
      %p63 = scmp.eq.s32.totalorder %s22, 0
      %p64 = por %p62, %p63
      %p65 = scmp.ne.s32.totalorder %s53, %s54
      %p66 = scmp.eq.s32.totalorder %s23, 1
      %p67 = por %p65, %p66
      %p69 = scmp.ne.s32.totalorder %s54, %s68
      %p70 = scmp.eq.s32.totalorder %s23, 0
      %p71 = por %p69, %p70
      %s73 = sadd.s32 %s72, 1
      %p76 = scmp.eq.s32.totalorder %s17, 1
      %p77 = scmp.ne.s32.totalorder %s72, %s74
      %p78 = scmp.eq.s32.totalorder %s17, 0
      %p79 = por %p77, %p78
      %p80 = scmp.ne.s32.totalorder %s72, %s74
      %p81 = scmp.eq.s32.totalorder %s22, 1
      %p82 = por %p80, %p81
      %p83 = scmp.ne.s32.totalorder %s74, %s75
      %p84 = scmp.eq.s32.totalorder %s22, 0
      %p85 = por %p83, %p84
      %p86 = scmp.ne.s32.totalorder %s74, %s75
      %p87 = scmp.eq.s32.totalorder %s23, 1
      %p88 = por %p86, %p87
      %p90 = scmp.ne.s32.totalorder %s75, %s89
      %p91 = scmp.eq.s32.totalorder %s23, 0
      %p92 = por %p90, %p91
      %s94 = sadd.s32 %s93, 1
      %p97 = scmp.eq.s32.totalorder %s17, 1
      %p98 = scmp.ne.s32.totalorder %s93, %s95
      %p99 = scmp.eq.s32.totalorder %s17, 0
      %p100 = por %p98, %p99
      %p101 = scmp.ne.s32.totalorder %s93, %s95
      %p102 = scmp.eq.s32.totalorder %s22, 1
      %p103 = por %p101, %p102
      %p104 = scmp.ne.s32.totalorder %s95, %s96
      %p105 = scmp.eq.s32.totalorder %s22, 0
      %p106 = por %p104, %p105
      %p107 = scmp.ne.s32.totalorder %s95, %s96
      %p108 = scmp.eq.s32.totalorder %s23, 1
      %p109 = por %p107, %p108
      %p111 = scmp.ne.s32.totalorder %s96, %s110
      %p112 = scmp.eq.s32.totalorder %s23, 0
      %p113 = por %p111, %p112
      %s115 = sadd.s32 %s114, 1
      %p118 = scmp.eq.s32.totalorder %s17, 1
      %p119 = scmp.ne.s32.totalorder %s114, %s116
      %p120 = scmp.eq.s32.totalorder %s17, 0
      %p121 = por %p119, %p120
      %p122 = scmp.ne.s32.totalorder %s114, %s116
      %p123 = scmp.eq.s32.totalorder %s22, 1
      %p124 = por %p122, %p123
      %p125 = scmp.ne.s32.totalorder %s116, %s117
      %p126 = scmp.eq.s32.totalorder %s22, 0
      %p127 = por %p125, %p126
      %p128 = scmp.ne.s32.totalorder %s116, %s117
      %p129 = scmp.eq.s32.totalorder %s23, 1
      %p130 = por %p128, %p129
      %p132 = scmp.ne.s32.totalorder %s117, %s131
      %p133 = scmp.eq.s32.totalorder %s23, 0
      %p134 = por %p132, %p133
      %s136 = sadd.s32 %s135, 1
      %p139 = scmp.eq.s32.totalorder %s17, 1
      %p140 = scmp.ne.s32.totalorder %s135, %s137
      %p141 = scmp.eq.s32.totalorder %s17, 0
      %p142 = por %p140, %p141
      %p143 = scmp.ne.s32.totalorder %s135, %s137
      %p144 = scmp.eq.s32.totalorder %s22, 1
      %p145 = por %p143, %p144
      %p146 = scmp.ne.s32.totalorder %s137, %s138
      %p147 = scmp.eq.s32.totalorder %s22, 0
      %p148 = por %p146, %p147
      %p149 = scmp.ne.s32.totalorder %s137, %s138
      %p150 = scmp.eq.s32.totalorder %s23, 1
      %p151 = por %p149, %p150
      %p153 = scmp.ne.s32.totalorder %s138, %s152
      %p154 = scmp.eq.s32.totalorder %s23, 0
      %p155 = por %p153, %p154
      %s157 = sadd.s32 %s156, 1
      %p160 = scmp.eq.s32.totalorder %s17, 1
      %p161 = scmp.ne.s32.totalorder %s156, %s158
      %p162 = scmp.eq.s32.totalorder %s17, 0
      %p163 = por %p161, %p162
      %p164 = scmp.ne.s32.totalorder %s156, %s158
      %p165 = scmp.eq.s32.totalorder %s22, 1
      %p166 = por %p164, %p165
      %p167 = scmp.ne.s32.totalorder %s158, %s159
      %p168 = scmp.eq.s32.totalorder %s22, 0
      %p169 = por %p167, %p168
      %p170 = scmp.ne.s32.totalorder %s158, %s159
      %p171 = scmp.eq.s32.totalorder %s23, 1
      %p172 = por %p170, %p171
      %p174 = scmp.ne.s32.totalorder %s159, %s173
      %p175 = scmp.eq.s32.totalorder %s23, 0
      %p176 = por %p174, %p175
      %s177 = ssub.s32 %s17, %s24
      %p178 = scmp.eq.s32.totalorder %s177, 0
      %s180 = sadd.s32 %s179, 1
      %s181 = scalar_select %p178, %s179, %s180
      %p184 = pneg %p178
      %p185 = scmp.eq.s32.totalorder %s17, 1
      %p186 = por %p184, %p185
      %p187 = scmp.ne.s32.totalorder %s179, %s182
      %p188 = scmp.eq.s32.totalorder %s17, 0
      %p189 = por %p187, %p188
      %p190 = scmp.ne.s32.totalorder %s179, %s182
      %p191 = scmp.eq.s32.totalorder %s22, 1
      %p192 = por %p190, %p191
      %p193 = scmp.ne.s32.totalorder %s182, %s183
      %p194 = scmp.eq.s32.totalorder %s22, 0
      %p195 = por %p193, %p194
      %p196 = scmp.ne.s32.totalorder %s182, %s183
      %p197 = scmp.eq.s32.totalorder %s23, 1
      %p198 = por %p196, %p197
      %p200 = scmp.ne.s32.totalorder %s183, %s199
      %p201 = scmp.eq.s32.totalorder %s23, 0
      %p202 = por %p200, %p201
      %p203 = scmp.le.s32.totalorder 1, %s17
      %p204 = scmp.lt.s32.totalorder %s17, 3
      %p205 = pnand %p203, %p204
      %p206 = pneg %p205
      // Predicated region
      $region9: #{tpu_custom_call.1} parent=5 // pred_check
        _
      $region10: #{tpu_custom_call.1} parent=5 // pred_check_branch
        %208 = sbr.rel (%p205) target = $region12
      $region11: #{tpu_custom_call.1} parent=5 // pred_region
        %s209 = ssub.s32 %s17, 1
        // Predicated region
        $region13: #{tpu_custom_call.1} parent=11 // pred_check
          %p210 = pneg %p64
        $region14: #{tpu_custom_call.1} parent=11 // pred_check_branch
          %212 = sbr.rel (%p210) target = $region16
        $region15: #{tpu_custom_call.1} parent=11 // pred_region
          _
        $region16: #{tpu_custom_call.1} parent=11 // pred_fallthru
          _
        // Predicated region
        $region17: #{tpu_custom_call.1} parent=11 // pred_check
          %p213 = pneg %p85
        $region18: #{tpu_custom_call.1} parent=11 // pred_check_branch
          %215 = sbr.rel (%p213) target = $region20
        $region19: #{tpu_custom_call.1} parent=11 // pred_region
          _
        $region20: #{tpu_custom_call.1} parent=11 // pred_fallthru
          _
        // Predicated region
        $region21: #{tpu_custom_call.1} parent=11 // pred_check
          %p216 = pneg %p106
        $region22: #{tpu_custom_call.1} parent=11 // pred_check_branch
          %218 = sbr.rel (%p216) target = $region24
        $region23: #{tpu_custom_call.1} parent=11 // pred_region
          %s220 = ssub.s32 2048, 2048
          %221 = vsyncadd [#allocation3], %s220
          %s222 = sshll.u32 [#allocation2], 4
          %s223 = int_to_ptr.vmem [resolvable:$true] %s222
          %228 = dma.hbm_to_vmem [thread:$0]  %s3, 2048, %s223, [#allocation3], 64, 64, 4
        $region24: #{tpu_custom_call.1} parent=11 // pred_fallthru
          _
        // Predicated region
        $region25: #{tpu_custom_call.1} parent=11 // pred_check
          %p229 = pneg %p127
        $region26: #{tpu_custom_call.1} parent=11 // pred_check_branch
          %231 = sbr.rel (%p229) target = $region28
        $region27: #{tpu_custom_call.1} parent=11 // pred_region
          _
        $region28: #{tpu_custom_call.1} parent=11 // pred_fallthru
          _
        // Predicated region
        $region29: #{tpu_custom_call.1} parent=11 // pred_check
          %p232 = pneg %p148
        $region30: #{tpu_custom_call.1} parent=11 // pred_check_branch
          %234 = sbr.rel (%p232) target = $region32
        $region31: #{tpu_custom_call.1} parent=11 // pred_region
          _
        $region32: #{tpu_custom_call.1} parent=11 // pred_fallthru
          _
        // Predicated region
        $region33: #{tpu_custom_call.1} parent=11 // pred_check
          %p235 = pneg %p169
        $region34: #{tpu_custom_call.1} parent=11 // pred_check_branch
          %237 = sbr.rel (%p235) target = $region36
        $region35: #{tpu_custom_call.1} parent=11 // pred_region
          _
        $region36: #{tpu_custom_call.1} parent=11 // pred_fallthru
          _
      $region12: #{tpu_custom_call.1} parent=5 // pred_fallthru
        _
      %p238 = scmp.lt.s32.totalorder %s17, 2
      // Predicated region
      $region37: #{tpu_custom_call.1} parent=5 // pred_check
        %p239 = pneg %p238
      $region38: #{tpu_custom_call.1} parent=5 // pred_check_branch
        %241 = sbr.rel (%p239) target = $region40
      $region39: #{tpu_custom_call.1} parent=5 // pred_region
        // Predicated region
        $region41: #{tpu_custom_call.1} parent=39 // pred_check
          %p242 = pneg %p37
        $region42: #{tpu_custom_call.1} parent=39 // pred_check_branch
          %244 = sbr.rel (%p242) target = $region44
        $region43: #{tpu_custom_call.1} parent=39 // pred_region
          %s245 = smul.u32 4, %s17
          %p246 = scmp.lt.s32.totalorder %s245, 7
          %s247 = scalar_select %p246, %s245, 7
          %s248 = smul.addr %s247, 8
          %s249 = scalar_lea.vmem %s0, %s248
          %s250 = smul.u32 4, %s17
        $region44: #{tpu_custom_call.1} parent=39 // pred_fallthru
          _
      $region40: #{tpu_custom_call.1} parent=5 // pred_fallthru
        _
      %p251 = scmp.le.s32.totalorder 1, %s17
      %p252 = scmp.lt.s32.totalorder %s17, 3
      %p253 = pnand %p251, %p252
      %p254 = pneg %p253
      // Predicated region
      $region45: #{tpu_custom_call.1} parent=5 // pred_check
        _
      $region46: #{tpu_custom_call.1} parent=5 // pred_check_branch
        %256 = sbr.rel (%p253) target = $region48
      $region47: #{tpu_custom_call.1} parent=5 // pred_region
        %s257 = ssub.s32 %s17, 1
        // Predicated region
        $region49: #{tpu_custom_call.1} parent=47 // pred_check
          %p258 = pneg %p106
        $region50: #{tpu_custom_call.1} parent=47 // pred_check_branch
          %260 = sbr.rel (%p258) target = $region52
        $region51: #{tpu_custom_call.1} parent=47 // pred_region
          %261 = dma.done [#allocation3], 2048
        $region52: #{tpu_custom_call.1} parent=47 // pred_fallthru
          _
        %s262 = smul.u32 4, %s22
        %p263 = scmp.lt.s32.totalorder %s262, 7
        %s264 = scalar_select %p263, %s262, 7
        %s265 = smul.addr %s264, 8
        %s266 = scalar_lea.vmem %s0, %s265
        %p267 = pneg %p43
        %p268 = pneg %p40
        %p269 = pneg %p64
        %p270 = pneg %p61
        %p271 = pneg %p85
        %p272 = pneg %p82
        %p273 = pneg %p106
        %p274 = pneg %p103
        %p275 = pneg %p127
        %p276 = pneg %p124
        %p277 = pneg %p148
        %p278 = pneg %p145
        %p279 = pneg %p169
        %p280 = pneg %p166
        %p281 = pneg %p195
        %p282 = pneg %p192
        %s283 = sand.u32 %s182, 1
        %s284 = scalar_lea.sflag [#allocation4], %s283
        %s285 = sand.u32 %s182, 1
        %s286 = smul.addr %s285, 32
        %s287 = scalar_lea.vmem [#allocation5], %s286
        %s288 = smul.u32 4, %s22
        %p289 = scmp.lt.s32.totalorder %s288, 7
        %s290 = scalar_select %p289, %s288, 7
        %s291 = smul.addr %s290, 8
        %s292 = scalar_lea.vmem %s0, %s291
        %s293 = smul.u32 4, %s22
        %s294 = smul.u32 4, %s22
        %v296 = vld [vmem:[%s292] sm:$0xff]
        %v297 = vld [vmem:[%s292 + $0x8] sm:$0xff]
        %v298 = vld [vmem:[%s292 + $0x10] sm:$0xff]
        %v299 = vld [vmem:[%s292 + $0x18] sm:$0xff]
        %v300 = vld [vmem:[%s1] sm:$0x1f]
        %v301 = vld [vmem:[%s1 + $0x8] sm:$0x1f]
        %v302 = vld [vmem:[%s2] sm:$0x3]
        %304 = vset.pattern.permute.xlu0 0
        %305 = vperm.xlu0 %304, %v296
        %v306 = vpop.permute.xlu0 %305
        %309 = vset.pattern.permute.xlu0 0
        %310 = vperm.xlu0 %309, %v297
        %v311 = vpop.permute.xlu0 %310
        %314 = vset.pattern.permute.xlu0 0
        %315 = vperm.xlu0 %314, %v298
        %v316 = vpop.permute.xlu0 %315
        %319 = vset.pattern.permute.xlu0 0
        %320 = vperm.xlu0 %319, %v299
        %v321 = vpop.permute.xlu0 %320
        %v323 = vlaneseq
        %v324 = vshrl.u32 %v323, 7
        %v325 = vsub.s32 0, %v324
        %v326 = vrot.slane %v300, %v325
        %v327 = vlaneseq
        %v328 = vshrl.u32 %v327, 7
        %v329 = vsub.s32 0, %v328
        %v330 = vrot.slane %v301, %v329
        %v331 = vmul.f32 %v306, %v326
        %v332 = vmul.f32 %v306, %v330
        %v333 = vmul.f32 %v311, %v326
        %v334 = vmul.f32 %v311, %v330
        %v335 = vmul.f32 %v316, %v326
        %v336 = vmul.f32 %v316, %v330
        %v337 = vmul.f32 %v321, %v326
        %v338 = vmul.f32 %v321, %v330
        %v340 = vlaneseq
        %v341 = vshrl.u32 %v340, 7
        %v342 = vsub.s32 0, %v341
        %v343 = vrot.slane %v302, %v342
        %v344 = vlaneseq
        %v345 = vshrl.u32 %v344, 7
        %v346 = vsub.s32 1, %v345
        %v347 = vrot.slane %v302, %v346
        %v350 = vadd.f32 %v343, %v331
        %v351 = vadd.f32 %v347, %v332
        %v352 = vadd.f32 %v343, %v333
        %v353 = vadd.f32 %v347, %v334
        %v354 = vadd.f32 %v343, %v335
        %v355 = vadd.f32 %v347, %v336
        %v356 = vadd.f32 %v343, %v337
        %v357 = vadd.f32 %v347, %v338
        %358 = vset.pattern.permute.xlu0 1
        %359 = vperm.xlu0 %358, %v296
        %v360 = vpop.permute.xlu0 %359
        %362 = vset.pattern.permute.xlu0 1
        %363 = vperm.xlu0 %362, %v297
        %v364 = vpop.permute.xlu0 %363
        %366 = vset.pattern.permute.xlu0 1
        %367 = vperm.xlu0 %366, %v298
        %v368 = vpop.permute.xlu0 %367
        %370 = vset.pattern.permute.xlu0 1
        %371 = vperm.xlu0 %370, %v299
        %v372 = vpop.permute.xlu0 %371
        %v374 = vlaneseq
        %v375 = vshrl.u32 %v374, 7
        %v376 = vsub.s32 1, %v375
        %v377 = vrot.slane %v300, %v376
        %v378 = vlaneseq
        %v379 = vshrl.u32 %v378, 7
        %v380 = vsub.s32 1, %v379
        %v381 = vrot.slane %v301, %v380
        %v382 = vmul.f32 %v360, %v377
        %v383 = vmul.f32 %v360, %v381
        %v384 = vmul.f32 %v364, %v377
        %v385 = vmul.f32 %v364, %v381
        %v386 = vmul.f32 %v368, %v377
        %v387 = vmul.f32 %v368, %v381
        %v388 = vmul.f32 %v372, %v377
        %v389 = vmul.f32 %v372, %v381
        %v390 = vadd.f32 %v350, %v382
        %v391 = vadd.f32 %v351, %v383
        %v392 = vadd.f32 %v352, %v384
        %v393 = vadd.f32 %v353, %v385
        %v394 = vadd.f32 %v354, %v386
        %v395 = vadd.f32 %v355, %v387
        %v396 = vadd.f32 %v356, %v388
        %v397 = vadd.f32 %v357, %v389
        %398 = vset.pattern.permute.xlu0 2
        %399 = vperm.xlu0 %398, %v296
        %v400 = vpop.permute.xlu0 %399
        %402 = vset.pattern.permute.xlu0 2
        %403 = vperm.xlu0 %402, %v297
        %v404 = vpop.permute.xlu0 %403
        %406 = vset.pattern.permute.xlu0 2
        %407 = vperm.xlu0 %406, %v298
        %v408 = vpop.permute.xlu0 %407
        %410 = vset.pattern.permute.xlu0 2
        %411 = vperm.xlu0 %410, %v299
        %v412 = vpop.permute.xlu0 %411
        %v414 = vlaneseq
        %v415 = vshrl.u32 %v414, 7
        %v416 = vsub.s32 2, %v415
        %v417 = vrot.slane %v300, %v416
        %v418 = vlaneseq
        %v419 = vshrl.u32 %v418, 7
        %v420 = vsub.s32 2, %v419
        %v421 = vrot.slane %v301, %v420
        %v422 = vmul.f32 %v400, %v417
        %v423 = vmul.f32 %v400, %v421
        %v424 = vmul.f32 %v404, %v417
        %v425 = vmul.f32 %v404, %v421
        %v426 = vmul.f32 %v408, %v417
        %v427 = vmul.f32 %v408, %v421
        %v428 = vmul.f32 %v412, %v417
        %v429 = vmul.f32 %v412, %v421
        %v430 = vadd.f32 %v390, %v422
        %v431 = vadd.f32 %v391, %v423
        %v432 = vadd.f32 %v392, %v424
        %v433 = vadd.f32 %v393, %v425
        %v434 = vadd.f32 %v394, %v426
        %v435 = vadd.f32 %v395, %v427
        %v436 = vadd.f32 %v396, %v428
        %v437 = vadd.f32 %v397, %v429
        %438 = vset.pattern.permute.xlu0 3
        %439 = vperm.xlu0 %438, %v296
        %v440 = vpop.permute.xlu0 %439
        %442 = vset.pattern.permute.xlu0 3
        %443 = vperm.xlu0 %442, %v297
        %v444 = vpop.permute.xlu0 %443
        %446 = vset.pattern.permute.xlu0 3
        %447 = vperm.xlu0 %446, %v298
        %v448 = vpop.permute.xlu0 %447
        %450 = vset.pattern.permute.xlu0 3
        %451 = vperm.xlu0 %450, %v299
        %v452 = vpop.permute.xlu0 %451
        %v454 = vlaneseq
        %v455 = vshrl.u32 %v454, 7
        %v456 = vsub.s32 3, %v455
        %v457 = vrot.slane %v300, %v456
        %v458 = vlaneseq
        %v459 = vshrl.u32 %v458, 7
        %v460 = vsub.s32 3, %v459
        %v461 = vrot.slane %v301, %v460
        %v462 = vmul.f32 %v440, %v457
        %v463 = vmul.f32 %v440, %v461
        %v464 = vmul.f32 %v444, %v457
        %v465 = vmul.f32 %v444, %v461
        %v466 = vmul.f32 %v448, %v457
        %v467 = vmul.f32 %v448, %v461
        %v468 = vmul.f32 %v452, %v457
        %v469 = vmul.f32 %v452, %v461
        %v470 = vadd.f32 %v430, %v462
        %v471 = vadd.f32 %v431, %v463
        %v472 = vadd.f32 %v432, %v464
        %v473 = vadd.f32 %v433, %v465
        %v474 = vadd.f32 %v434, %v466
        %v475 = vadd.f32 %v435, %v467
        %v476 = vadd.f32 %v436, %v468
        %v477 = vadd.f32 %v437, %v469
        %478 = vset.pattern.permute.xlu0 4
        %479 = vperm.xlu0 %478, %v296
        %v480 = vpop.permute.xlu0 %479
        %482 = vset.pattern.permute.xlu0 4
        %483 = vperm.xlu0 %482, %v297
        %v484 = vpop.permute.xlu0 %483
        %486 = vset.pattern.permute.xlu0 4
        %487 = vperm.xlu0 %486, %v298
        %v488 = vpop.permute.xlu0 %487
        %490 = vset.pattern.permute.xlu0 4
        %491 = vperm.xlu0 %490, %v299
        %v492 = vpop.permute.xlu0 %491
        %v494 = vlaneseq
        %v495 = vshrl.u32 %v494, 7
        %v496 = vsub.s32 4, %v495
        %v497 = vrot.slane %v300, %v496
        %v498 = vlaneseq
        %v499 = vshrl.u32 %v498, 7
        %v500 = vsub.s32 4, %v499
        %v501 = vrot.slane %v301, %v500
        %v502 = vmul.f32 %v480, %v497
        %v503 = vmul.f32 %v480, %v501
        %v504 = vmul.f32 %v484, %v497
        %v505 = vmul.f32 %v484, %v501
        %v506 = vmul.f32 %v488, %v497
        %v507 = vmul.f32 %v488, %v501
        %v508 = vmul.f32 %v492, %v497
        %v509 = vmul.f32 %v492, %v501
        %v510 = vadd.f32 %v470, %v502
        %v511 = vadd.f32 %v471, %v503
        %v512 = vadd.f32 %v472, %v504
        %v513 = vadd.f32 %v473, %v505
        %v514 = vadd.f32 %v474, %v506
        %v515 = vadd.f32 %v475, %v507
        %v516 = vadd.f32 %v476, %v508
        %v517 = vadd.f32 %v477, %v509
        %v518 = vmax.f32 %v510, 0.0
        %v519 = vmax.f32 %v511, 0.0
        %v520 = vmax.f32 %v512, 0.0
        %v521 = vmax.f32 %v513, 0.0
        %v522 = vmax.f32 %v514, 0.0
        %v523 = vmax.f32 %v515, 0.0
        %v524 = vmax.f32 %v516, 0.0
        %v525 = vmax.f32 %v517, 0.0
        %v526 = vpack.c.bf16 %v520, %v518
        %v527 = vpack.c.bf16 %v521, %v519
        %v528 = vpack.c.bf16 %v524, %v522
        %v529 = vpack.c.bf16 %v525, %v523
        %v530 = vld [vmem:[#allocation2] sm:$0xf]
        %v531 = vld [vmem:[#allocation2 + $0x4] sm:$0xf]
        %v532 = vld [vmem:[#allocation2 + $0x8] sm:$0xf]
        %v533 = vld [vmem:[#allocation2 + $0xc] sm:$0xf]
        %v534 = vld [vmem:[#allocation2 + $0x10] sm:$0xf]
        %v535 = vld [vmem:[#allocation2 + $0x14] sm:$0xf]
        %v536 = vld [vmem:[#allocation2 + $0x18] sm:$0xf]
        %v537 = vld [vmem:[#allocation2 + $0x1c] sm:$0xf]
        %v538 = vld [vmem:[#allocation2 + $0x20] sm:$0xf]
        %v539 = vld [vmem:[#allocation2 + $0x24] sm:$0xf]
        %v540 = vld [vmem:[#allocation2 + $0x28] sm:$0xf]
        %v541 = vld [vmem:[#allocation2 + $0x2c] sm:$0xf]
        %v542 = vld [vmem:[#allocation2 + $0x30] sm:$0xf]
        %v543 = vld [vmem:[#allocation2 + $0x34] sm:$0xf]
        %v544 = vld [vmem:[#allocation2 + $0x38] sm:$0xf]
        %v545 = vld [vmem:[#allocation2 + $0x3c] sm:$0xf]
        %v546 = vld [vmem:[#allocation2 + $0x40] sm:$0xf]
        %v547 = vld [vmem:[#allocation2 + $0x44] sm:$0xf]
        %v548 = vld [vmem:[#allocation2 + $0x48] sm:$0xf]
        %v549 = vld [vmem:[#allocation2 + $0x4c] sm:$0xf]
        %v550 = vld [vmem:[#allocation2 + $0x50] sm:$0xf]
        %v551 = vld [vmem:[#allocation2 + $0x54] sm:$0xf]
        %v552 = vld [vmem:[#allocation2 + $0x58] sm:$0xf]
        %v553 = vld [vmem:[#allocation2 + $0x5c] sm:$0xf]
        %v554 = vld [vmem:[#allocation2 + $0x60] sm:$0xf]
        %v555 = vld [vmem:[#allocation2 + $0x64] sm:$0xf]
        %v556 = vld [vmem:[#allocation2 + $0x68] sm:$0xf]
        %v557 = vld [vmem:[#allocation2 + $0x6c] sm:$0xf]
        %v558 = vld [vmem:[#allocation2 + $0x70] sm:$0xf]
        %v559 = vld [vmem:[#allocation2 + $0x74] sm:$0xf]
        %v560 = vld [vmem:[#allocation2 + $0x78] sm:$0xf]
        %v561 = vld [vmem:[#allocation2 + $0x7c] sm:$0xf]
        %v562 = vld [vmem:[%s4] sm:$0x1]
        %v564 = vlaneseq
        %v565 = vshrl.u32 %v564, 7
        %v566 = vsub.s32 0, %v565
        %v567 = vrot.slane %v562, %v566
        %v601 = vunpack.c.l.b16 %v530
        %v602 = vunpack.c.l.b16 %v531
        %v603 = vunpack.c.l.b16 %v532
        %v604 = vunpack.c.l.b16 %v533
        %v605 = vunpack.c.l.b16 %v534
        %v606 = vunpack.c.l.b16 %v535
        %v607 = vunpack.c.l.b16 %v536
        %v608 = vunpack.c.l.b16 %v537
        %v609 = vunpack.c.l.b16 %v538
        %v610 = vunpack.c.l.b16 %v539
        %v611 = vunpack.c.l.b16 %v540
        %v612 = vunpack.c.l.b16 %v541
        %v613 = vunpack.c.l.b16 %v542
        %v614 = vunpack.c.l.b16 %v543
        %v615 = vunpack.c.l.b16 %v544
        %v616 = vunpack.c.l.b16 %v545
        %v617 = vunpack.c.l.b16 %v546
        %v618 = vunpack.c.l.b16 %v547
        %v619 = vunpack.c.l.b16 %v548
        %v620 = vunpack.c.l.b16 %v549
        %v621 = vunpack.c.l.b16 %v550
        %v622 = vunpack.c.l.b16 %v551
        %v623 = vunpack.c.l.b16 %v552
        %v624 = vunpack.c.l.b16 %v553
        %v625 = vunpack.c.l.b16 %v554
        %v626 = vunpack.c.l.b16 %v555
        %v627 = vunpack.c.l.b16 %v556
        %v628 = vunpack.c.l.b16 %v557
        %v629 = vunpack.c.l.b16 %v558
        %v630 = vunpack.c.l.b16 %v559
        %v631 = vunpack.c.l.b16 %v560
        %v632 = vunpack.c.l.b16 %v561
        %v633 = vpack.c.b16 %v602, %v601
        %v634 = vpack.c.b16 %v604, %v603
        %v635 = vpack.c.b16 %v606, %v605
        %v636 = vpack.c.b16 %v608, %v607
        %v637 = vpack.c.b16 %v610, %v609
        %v638 = vpack.c.b16 %v612, %v611
        %v639 = vpack.c.b16 %v614, %v613
        %v640 = vpack.c.b16 %v616, %v615
        %v641 = vpack.c.b16 %v618, %v617
        %v642 = vpack.c.b16 %v620, %v619
        %v643 = vpack.c.b16 %v622, %v621
        %v644 = vpack.c.b16 %v624, %v623
        %v645 = vpack.c.b16 %v626, %v625
        %v646 = vpack.c.b16 %v628, %v627
        %v647 = vpack.c.b16 %v630, %v629
        %v648 = vpack.c.b16 %v632, %v631
        %665 = vmatprep.subr.bf16.mxu0 0
        %666 = vmatpush1.bf16.msra.mxu0 %v633
        %667 = vmatprep.subr.bf16.mxu0 0
        %668 = vmatpush1.bf16.msra.mxu0 %v634
        %669 = vmatprep.subr.bf16.mxu0 0
        %670 = vmatpush1.bf16.msra.mxu0 %v635
        %671 = vmatprep.subr.bf16.mxu0 0
        %672 = vmatpush1.bf16.msra.mxu0 %v636
        %673 = vmatprep.subr.bf16.mxu0 0
        %674 = vmatpush1.bf16.msra.mxu0 %v637
        %675 = vmatprep.subr.bf16.mxu0 0
        %676 = vmatpush1.bf16.msra.mxu0 %v638
        %677 = vmatprep.subr.bf16.mxu0 0
        %678 = vmatpush1.bf16.msra.mxu0 %v639
        %679 = vmatprep.subr.bf16.mxu0 0
        %680 = vmatpush1.bf16.msra.mxu0 %v640
        %681 = vmatprep.subr.bf16.mxu0 0
        %682 = vmatpush1.bf16.msra.mxu0 %v641
        %683 = vmatprep.subr.bf16.mxu0 0
        %684 = vmatpush1.bf16.msra.mxu0 %v642
        %685 = vmatprep.subr.bf16.mxu0 0
        %686 = vmatpush1.bf16.msra.mxu0 %v643
        %687 = vmatprep.subr.bf16.mxu0 0
        %688 = vmatpush1.bf16.msra.mxu0 %v644
        %689 = vmatprep.subr.bf16.mxu0 0
        %690 = vmatpush1.bf16.msra.mxu0 %v645
        %691 = vmatprep.subr.bf16.mxu0 0
        %692 = vmatpush1.bf16.msra.mxu0 %v646
        %693 = vmatprep.subr.bf16.mxu0 0
        %694 = vmatpush1.bf16.msra.mxu0 %v647
        %695 = vmatprep.subr.bf16.mxu0 0
        %696 = vmatpush1.bf16.msra.mxu0 %v648
        %697 = vmatprep.mubr.bf16.mxu0 %v527
        %698 = vmatmul.mubr.bf16.gmra.mrb[0].mxu0 %v526
        %v699 = vpop.f32.mrb[0].mxu0
        %v700 = vadd.f32 %v567, %v699
        %v701 = vpop.f32.mrb[0].mxu0
        %v702 = vpop.f32.mrb[0].mxu0
        %v703 = vadd.f32 %v567, %v702
        %v704 = vpop.f32.mrb[0].mxu0
        %705 = vmatprep.mubr.bf16.mxu0 %v529
        %706 = vmatmul.mubr.bf16.gmra.mrb[0].mxu0 %v528
        %v707 = vpop.f32.mrb[0].mxu0
        %v708 = vadd.f32 %v567, %v707
        %v709 = vpop.f32.mrb[0].mxu0
        %v710 = vpop.f32.mrb[0].mxu0
        %v711 = vadd.f32 %v567, %v710
        %v712 = vpop.f32.mrb[0].mxu0
        %713 = vdwg.mxu0
        %v714 = vmax.f32 %v700, 0.0
        %v715 = vmax.f32 %v703, 0.0
        %v716 = vmax.f32 %v708, 0.0
        %v717 = vmax.f32 %v711, 0.0
        %v718 = vpack.c.bf16 %v715, %v714
        %v719 = vpack.c.bf16 %v717, %v716
        %v720 = vld [vmem:[%s5] sm:$0xf]
        %v721 = vld [vmem:[%s5 + $0x4] sm:$0xf]
        %v722 = vld [vmem:[%s5 + $0x8] sm:$0xf]
        %v723 = vld [vmem:[%s5 + $0xc] sm:$0xf]
        %v724 = vld [vmem:[%s5 + $0x10] sm:$0xf]
        %v725 = vld [vmem:[%s5 + $0x14] sm:$0xf]
        %v726 = vld [vmem:[%s5 + $0x18] sm:$0xf]
        %v727 = vld [vmem:[%s5 + $0x1c] sm:$0xf]
        %v728 = vld [vmem:[%s5 + $0x20] sm:$0xf]
        %v729 = vld [vmem:[%s5 + $0x24] sm:$0xf]
        %v730 = vld [vmem:[%s5 + $0x28] sm:$0xf]
        %v731 = vld [vmem:[%s5 + $0x2c] sm:$0xf]
        %v732 = vld [vmem:[%s5 + $0x30] sm:$0xf]
        %v733 = vld [vmem:[%s5 + $0x34] sm:$0xf]
        %v734 = vld [vmem:[%s5 + $0x38] sm:$0xf]
        %v735 = vld [vmem:[%s5 + $0x3c] sm:$0xf]
        %v736 = vld [vmem:[%s6] sm:$0x1]
        %v738 = vlaneseq
        %v739 = vshrl.u32 %v738, 7
        %v740 = vsub.s32 0, %v739
        %v741 = vrot.slane %v736, %v740
        %v759 = vunpack.c.l.b16 %v720
        %v760 = vunpack.c.l.b16 %v721
        %v761 = vunpack.c.l.b16 %v722
        %v762 = vunpack.c.l.b16 %v723
        %v763 = vunpack.c.l.b16 %v724
        %v764 = vunpack.c.l.b16 %v725
        %v765 = vunpack.c.l.b16 %v726
        %v766 = vunpack.c.l.b16 %v727
        %v767 = vunpack.c.l.b16 %v728
        %v768 = vunpack.c.l.b16 %v729
        %v769 = vunpack.c.l.b16 %v730
        %v770 = vunpack.c.l.b16 %v731
        %v771 = vunpack.c.l.b16 %v732
        %v772 = vunpack.c.l.b16 %v733
        %v773 = vunpack.c.l.b16 %v734
        %v774 = vunpack.c.l.b16 %v735
        %v775 = vpack.c.b16 %v760, %v759
        %v776 = vpack.c.b16 %v762, %v761
        %v777 = vpack.c.b16 %v764, %v763
        %v778 = vpack.c.b16 %v766, %v765
        %v779 = vpack.c.b16 %v768, %v767
        %v780 = vpack.c.b16 %v770, %v769
        %v781 = vpack.c.b16 %v772, %v771
        %v782 = vpack.c.b16 %v774, %v773
        %791 = vmatprep.subr.bf16.mxu0 0
        %792 = vmatpush1.bf16.msra.mxu0 %v775
        %793 = vmatprep.subr.bf16.mxu0 0
        %794 = vmatpush1.bf16.msra.mxu0 %v776
        %795 = vmatprep.subr.bf16.mxu0 0
        %796 = vmatpush1.bf16.msra.mxu0 %v777
        %797 = vmatprep.subr.bf16.mxu0 0
        %798 = vmatpush1.bf16.msra.mxu0 %v778
        %799 = vmatprep.subr.bf16.mxu0 0
        %800 = vmatpush1.bf16.msra.mxu0 %v779
        %801 = vmatprep.subr.bf16.mxu0 0
        %802 = vmatpush1.bf16.msra.mxu0 %v780
        %803 = vmatprep.subr.bf16.mxu0 0
        %804 = vmatpush1.bf16.msra.mxu0 %v781
        %805 = vmatprep.subr.bf16.mxu0 0
        %806 = vmatpush1.bf16.msra.mxu0 %v782
        %807 = vmatprep.subr.bf16.mxu0 0
        %808 = vmatpush1.bf16.msra.mxu0 0
        %809 = vmatprep.subr.bf16.mxu0 0
        %810 = vmatpush1.bf16.msra.mxu0 0
        %811 = vmatprep.subr.bf16.mxu0 0
        %812 = vmatpush1.bf16.msra.mxu0 0
        %813 = vmatprep.subr.bf16.mxu0 0
        %814 = vmatpush1.bf16.msra.mxu0 0
        %815 = vmatprep.subr.bf16.mxu0 0
        %816 = vmatpush1.bf16.msra.mxu0 0
        %817 = vmatprep.subr.bf16.mxu0 0
        %818 = vmatpush1.bf16.msra.mxu0 0
        %819 = vmatprep.subr.bf16.mxu0 0
        %820 = vmatpush1.bf16.msra.mxu0 0
        %821 = vmatprep.subr.bf16.mxu0 0
        %822 = vmatpush1.bf16.msra.mxu0 0
        %823 = vmatprep.mubr.bf16.mxu0 0
        %824 = vmatmul.mubr.bf16.gmra.mrb[0].mxu0 %v718
        %v825 = vpop.f32.mrb[0].mxu0
        %v826 = vadd.f32 %v741, %v825
        %v827 = vpop.f32.mrb[0].mxu0
        %v828 = vpop.f32.mrb[0].mxu0
        %v829 = vadd.f32 %v741, %v828
        %v830 = vpop.f32.mrb[0].mxu0
        %831 = vmatprep.mubr.bf16.mxu0 0
        %832 = vmatmul.mubr.bf16.gmra.mrb[0].mxu0 %v719
        %v833 = vpop.f32.mrb[0].mxu0
        %v834 = vadd.f32 %v741, %v833
        %v835 = vpop.f32.mrb[0].mxu0
        %v836 = vpop.f32.mrb[0].mxu0
        %v837 = vadd.f32 %v741, %v836
        %v838 = vpop.f32.mrb[0].mxu0
        %839 = vdwg.mxu0
        %840 = vst [vmem:[%s287] sm:$0xff] %v826
        %841 = vst [vmem:[%s287 + $0x8] sm:$0xff] %v829
        %842 = vst [vmem:[%s287 + $0x10] sm:$0xff] %v834
        %843 = vst [vmem:[%s287 + $0x18] sm:$0xff] %v837
        %s844 = sand.u32 %s182, 1
        %s845 = scalar_lea.sflag [#allocation4], %s844
        %s846 = sand.u32 %s182, 1
        %s847 = smul.addr %s846, 32
        %s848 = scalar_lea.vmem [#allocation5], %s847
        // Predicated region
        $region53: #{tpu_custom_call.1} parent=47 // pred_check
          %p849 = pneg %p192
        $region54: #{tpu_custom_call.1} parent=47 // pred_check_branch
          %851 = sbr.rel (%p849) target = $region56
        $region55: #{tpu_custom_call.1} parent=47 // pred_region
          %s852 = smul.u32 4, %s22
          %s854 = ssub.s32 512, 512
          %855 = vsyncadd %s845, %s854
          %s856 = smul.addr %s852, 128
          %s857 = scalar_lea.hbm %s7, %s856
          %s858 = sshll.u32 %s848, 4
          %s859 = int_to_ptr.vmem [resolvable:$true] %s858
          %864 = dma.vmem_to_hbm [thread:$0]  %s859, 512, %s857, %s845, 128, 128, 8
        $region56: #{tpu_custom_call.1} parent=47 // pred_fallthru
          _
      $region48: #{tpu_custom_call.1} parent=5 // pred_fallthru
        _
      %p865 = scmp.le.s32.totalorder 2, %s17
      // Predicated region
      $region57: #{tpu_custom_call.1} parent=5 // pred_check
        %p866 = pneg %p865
      $region58: #{tpu_custom_call.1} parent=5 // pred_check_branch
        %868 = sbr.rel (%p866) target = $region60
      $region59: #{tpu_custom_call.1} parent=5 // pred_region
        %s869 = ssub.s32 %s17, 2
        // Predicated region
        $region61: #{tpu_custom_call.1} parent=59 // pred_check
          %p870 = pneg %p198
        $region62: #{tpu_custom_call.1} parent=59 // pred_check_branch
          %872 = sbr.rel (%p870) target = $region64
        $region63: #{tpu_custom_call.1} parent=59 // pred_region
          %s873 = sand.u32 %s183, 1
          %s874 = scalar_lea.sflag [#allocation4], %s873
          %s875 = sand.u32 %s183, 1
          %s876 = smul.addr %s875, 32
          %s877 = scalar_lea.vmem [#allocation5], %s876
          %878 = dma.done %s874, 512
        $region64: #{tpu_custom_call.1} parent=59 // pred_fallthru
          _
      $region60: #{tpu_custom_call.1} parent=5 // pred_fallthru
        _
    $region6: #{tpu_custom_call.1} parent=1 // loop_footer
      %s21 = sadd.s32 1, %s17
    $region7: #{tpu_custom_call.1} parent=1 // loop_footer_branch
      %16 = sbr.rel target = $region3
    $region8: #{tpu_custom_call.1} parent=1 // loop_exit
      _
    %879 = vsyncpa [#allocation3], 1
    %s880 = scalar_lea.sflag [#allocation3], 1
    %881 = vsyncpa %s880, 1
    %882 = vsyncpa [#allocation4], 1
    %s883 = scalar_lea.sflag [#allocation4], 1
    %884 = vsyncpa %s883, 1

</llo_original>
